<compile_context>
chip_gen: v7x
topology: tpu7x:2x2x1
jax: 0.10.0
libtpu: 0.0.40
codegen_flags: <defaults>
</compile_context>

<pallas_src>
import jax
import jax.numpy as jnp
from jax.experimental import pallas as pl
from jax.experimental.pallas import tpu as pltpu

_LANES = 128
_SUBLANES = 8
_SLAB = _LANES * _SUBLANES  # 1024: granularity at which reshape is free
_HIDDEN = 10


def _pidnn_kernel(d_ref, t_ref, gb_ref, x_ref, o_ref):
    """y = bias' + g*x + sum_j d_j * max(x, t_j) on one [tr, 128] slab.

    d_ref, t_ref: (10,) f32 in SMEM; gb_ref: (2,) f32 in SMEM = [g, bias'].
    ~32 VPU ops per element, no hidden [N,10] activation, no MXU.
    """
    x = x_ref[...]
    acc = gb_ref[0] * x + gb_ref[1]                      # b2 folded into bias'
    for j in range(_HIDDEN):                              # static unroll
        acc = acc + d_ref[j] * jnp.maximum(x, t_ref[j])
    o_ref[...] = acc.astype(o_ref.dtype)


def _fold_params(w1, b1, w2, b2):
    """Wrapper-side algebraic folding of the 1->10->1 MLP (runtime weights)."""
    w1_v = w1.reshape(-1).astype(jnp.float32)            # (10,)
    b1_v = b1.reshape(-1).astype(jnp.float32)
    w2_v = w2.reshape(-1).astype(jnp.float32)
    b2_s = b2.reshape(()).astype(jnp.float32)

    c = w1_v * w2_v
    pos = w1_v > 0.0
    neg = w1_v < 0.0
    nonzero = pos | neg
    safe_w1 = jnp.where(nonzero, w1_v, 1.0)               # guard w1_j == 0
    t = jnp.where(nonzero, -b1_v / safe_w1, 0.0)           # never inf/nan

    d = jnp.where(pos, c, jnp.where(neg, -c, 0.0))
    g = jnp.sum(jnp.where(neg, c, 0.0))
    k = jnp.where(pos, -c * t,
                  jnp.where(neg, 0.0, w2_v * jnp.maximum(b1_v, 0.0)))
    bias = b2_s + jnp.sum(k)
    gb = jnp.stack([g, bias])
    return d, t, gb


def _run_slab(x_slab, d, t, gb, tile_rows):
    rows = x_slab.shape[0]                                 # multiple of 8
    tr = min(tile_rows, rows)
    tr = max(_SUBLANES, (tr // _SUBLANES) * _SUBLANES)     # sublane multiple
    grid = (pl.cdiv(rows, tr),)                            # partial last block
                                                           # is masked by Pallas
    smem = pl.BlockSpec(memory_space=pltpu.MemorySpace.SMEM)
    n_elems = rows * _LANES

    return pl.pallas_call(
        _pidnn_kernel,
        out_shape=jax.ShapeDtypeStruct((rows, _LANES), jnp.float32),
        grid=grid,
        in_specs=[
            smem, smem, smem,                              # resident scalars
            pl.BlockSpec((tr, _LANES), lambda i: (i, 0)),  # streamed x slab
        ],
        out_specs=pl.BlockSpec((tr, _LANES), lambda i: (i, 0)),
        compiler_params=pltpu.CompilerParams(
            dimension_semantics=("parallel",),
            vmem_limit_bytes=32 * 1024 * 1024),            # v5e-safe headroom
        cost_estimate=pl.CostEstimate(
            flops=32 * n_elems, transcendentals=0, bytes_accessed=8 * n_elems),
    )(d, t, gb, x_slab)


def pidnn_forward(x, w1, b1, w2, b2, *, tile_rows=2048):
    """PIDNN forward.

    x:  [N, 1] float32 (PyTorch layout)
    w1: [10, 1], b1: [10]   (fc1 = Linear(1, 10))
    w2: [1, 10], b2: [1]    (fc2 = Linear(10, 1))
    returns [N, 1] float32
    """
    n = x.shape[0]
    d, t, gb = _fold_params(w1, b1, w2, b2)

    if n % _SLAB == 0:
        # Fast path: free lane-dense reshape, no pad, no post-slice.
        x_slab = x.reshape(n // _LANES, _LANES).astype(jnp.float32)
        y_slab = _run_slab(x_slab, d, t, gb, tile_rows)
        return y_slab.reshape(n, 1)

    # Ragged fallback: pad only to the 1024-element slab granularity.
    n_pad = ((n + _SLAB - 1) // _SLAB) * _SLAB
    x_slab = jnp.pad(x.reshape(-1).astype(jnp.float32),
                     (0, n_pad - n)).reshape(n_pad // _LANES, _LANES)
    y_slab = _run_slab(x_slab, d, t, gb, tile_rows)
    return y_slab.reshape(-1)[:n].reshape(n, 1)


def init_params(key):
    # Deterministic synthetic init (PyTorch-default-like uniform ranges).
    k1, k2, k3, k4 = jax.random.split(key, 4)
    # fc1: Linear(1, 10) -> weight [10, 1], bias [10]; bound = 1/sqrt(1)
    w1 = jax.random.uniform(k1, (10, 1), jnp.float32, -1.0, 1.0)
    b1 = jax.random.uniform(k2, (10,), jnp.float32, -1.0, 1.0)
    # fc2: Linear(10, 1) -> weight [1, 10], bias [1]; bound = 1/sqrt(10)
    bound2 = 1.0 / jnp.sqrt(10.0)
    w2 = jax.random.uniform(k3, (1, 10), jnp.float32, -bound2, bound2)
    b2 = jax.random.uniform(k4, (1,), jnp.float32, -bound2, bound2)
    return w1, b1, w2, b2


if __name__ == "__main__":
    key = jax.random.PRNGKey(0)
    kx, kp = jax.random.split(key)
    w1, b1, w2, b2 = init_params(kp)

    fwd = jax.jit(pidnn_forward)

    # Fast path: 1024 rows -> one lane-dense (8, 128) f32 slab, no pad/slice.
    N = 1024
    x = jax.random.normal(kx, (N, 1), jnp.float32)
    out = jax.block_until_ready(fwd(x, w1, b1, w2, b2))
    ref = jnp.maximum(x @ w1.T + b1, 0.0) @ w2.T + b2
    assert out.shape == (N, 1)
    assert jnp.allclose(out, ref, atol=1e-5, rtol=1e-5)

    # Ragged fallback path (N not a multiple of 1024).
    N2 = 1000
    x2 = x[:N2]
    out2 = jax.block_until_ready(fwd(x2, w1, b1, w2, b2))
    assert out2.shape == (N2, 1)
    assert jnp.allclose(out2, ref[:N2], atol=1e-5, rtol=1e-5)

    print("KERNEL_OK")
</pallas_src>

<mosaic_0001>
module attributes {stable_mosaic.version = 11 : i64} {
  func.func @_pidnn_kernel(%arg0: i32, %arg1: memref<10xf32, #tpu.memory_space<smem>>, %arg2: memref<10xf32, #tpu.memory_space<smem>>, %arg3: memref<2xf32, #tpu.memory_space<smem>>, %arg4: memref<8x128xf32, #tpu.memory_space<vmem>>, %arg5: memref<8x128xf32, #tpu.memory_space<vmem>>) attributes {dimension_semantics = [#tpu.dimension_semantics<parallel>], iteration_bounds = array<i64: 1>, scalar_prefetch = 0 : i64, scratch_operands = 0 : i64, tpu.core_type = #tpu.core_type<tc>, window_params = [{transform_indices = @transform_0, window_bounds = array<i64: 10>}, {transform_indices = @transform_1, window_bounds = array<i64: 10>}, {transform_indices = @transform_2, window_bounds = array<i64: 2>}, {transform_indices = @transform_3, window_bounds = array<i64: 8, 128>}, {transform_indices = @transform_4, window_bounds = array<i64: 8, 128>}]} {
    %c0 = arith.constant 0 : index
    %c0_0 = arith.constant 0 : index
    %0 = vector.load %arg4[%c0, %c0_0] : memref<8x128xf32, #tpu.memory_space<vmem>>, vector<8x128xf32>
    %c0_1 = arith.constant 0 : index
    %1 = memref.load %arg3[%c0_1] : memref<2xf32, #tpu.memory_space<smem>>
    %2 = vector.broadcast %1 : f32 to vector<8x128xf32>
    %3 = arith.mulf %2, %0 : vector<8x128xf32>
    %c1 = arith.constant 1 : index
    %4 = memref.load %arg3[%c1] : memref<2xf32, #tpu.memory_space<smem>>
    %5 = vector.broadcast %4 : f32 to vector<8x128xf32>
    %6 = arith.addf %3, %5 : vector<8x128xf32>
    %c0_2 = arith.constant 0 : index
    %7 = memref.load %arg1[%c0_2] : memref<10xf32, #tpu.memory_space<smem>>
    %c0_3 = arith.constant 0 : index
    %8 = memref.load %arg2[%c0_3] : memref<10xf32, #tpu.memory_space<smem>>
    %9 = vector.broadcast %8 : f32 to vector<8x128xf32>
    %10 = arith.maximumf %0, %9 : vector<8x128xf32>
    %11 = vector.broadcast %7 : f32 to vector<8x128xf32>
    %12 = arith.mulf %11, %10 : vector<8x128xf32>
    %13 = arith.addf %6, %12 : vector<8x128xf32>
    %c1_4 = arith.constant 1 : index
    %14 = memref.load %arg1[%c1_4] : memref<10xf32, #tpu.memory_space<smem>>
    %c1_5 = arith.constant 1 : index
    %15 = memref.load %arg2[%c1_5] : memref<10xf32, #tpu.memory_space<smem>>
    %16 = vector.broadcast %15 : f32 to vector<8x128xf32>
    %17 = arith.maximumf %0, %16 : vector<8x128xf32>
    %18 = vector.broadcast %14 : f32 to vector<8x128xf32>
    %19 = arith.mulf %18, %17 : vector<8x128xf32>
    %20 = arith.addf %13, %19 : vector<8x128xf32>
    %c2 = arith.constant 2 : index
    %21 = memref.load %arg1[%c2] : memref<10xf32, #tpu.memory_space<smem>>
    %c2_6 = arith.constant 2 : index
    %22 = memref.load %arg2[%c2_6] : memref<10xf32, #tpu.memory_space<smem>>
    %23 = vector.broadcast %22 : f32 to vector<8x128xf32>
    %24 = arith.maximumf %0, %23 : vector<8x128xf32>
    %25 = vector.broadcast %21 : f32 to vector<8x128xf32>
    %26 = arith.mulf %25, %24 : vector<8x128xf32>
    %27 = arith.addf %20, %26 : vector<8x128xf32>
    %c3 = arith.constant 3 : index
    %28 = memref.load %arg1[%c3] : memref<10xf32, #tpu.memory_space<smem>>
    %c3_7 = arith.constant 3 : index
    %29 = memref.load %arg2[%c3_7] : memref<10xf32, #tpu.memory_space<smem>>
    %30 = vector.broadcast %29 : f32 to vector<8x128xf32>
    %31 = arith.maximumf %0, %30 : vector<8x128xf32>
    %32 = vector.broadcast %28 : f32 to vector<8x128xf32>
    %33 = arith.mulf %32, %31 : vector<8x128xf32>
    %34 = arith.addf %27, %33 : vector<8x128xf32>
    %c4 = arith.constant 4 : index
    %35 = memref.load %arg1[%c4] : memref<10xf32, #tpu.memory_space<smem>>
    %c4_8 = arith.constant 4 : index
    %36 = memref.load %arg2[%c4_8] : memref<10xf32, #tpu.memory_space<smem>>
    %37 = vector.broadcast %36 : f32 to vector<8x128xf32>
    %38 = arith.maximumf %0, %37 : vector<8x128xf32>
    %39 = vector.broadcast %35 : f32 to vector<8x128xf32>
    %40 = arith.mulf %39, %38 : vector<8x128xf32>
    %41 = arith.addf %34, %40 : vector<8x128xf32>
    %c5 = arith.constant 5 : index
    %42 = memref.load %arg1[%c5] : memref<10xf32, #tpu.memory_space<smem>>
    %c5_9 = arith.constant 5 : index
    %43 = memref.load %arg2[%c5_9] : memref<10xf32, #tpu.memory_space<smem>>
    %44 = vector.broadcast %43 : f32 to vector<8x128xf32>
    %45 = arith.maximumf %0, %44 : vector<8x128xf32>
    %46 = vector.broadcast %42 : f32 to vector<8x128xf32>
    %47 = arith.mulf %46, %45 : vector<8x128xf32>
    %48 = arith.addf %41, %47 : vector<8x128xf32>
    %c6 = arith.constant 6 : index
    %49 = memref.load %arg1[%c6] : memref<10xf32, #tpu.memory_space<smem>>
    %c6_10 = arith.constant 6 : index
    %50 = memref.load %arg2[%c6_10] : memref<10xf32, #tpu.memory_space<smem>>
    %51 = vector.broadcast %50 : f32 to vector<8x128xf32>
    %52 = arith.maximumf %0, %51 : vector<8x128xf32>
    %53 = vector.broadcast %49 : f32 to vector<8x128xf32>
    %54 = arith.mulf %53, %52 : vector<8x128xf32>
    %55 = arith.addf %48, %54 : vector<8x128xf32>
    %c7 = arith.constant 7 : index
    %56 = memref.load %arg1[%c7] : memref<10xf32, #tpu.memory_space<smem>>
    %c7_11 = arith.constant 7 : index
    %57 = memref.load %arg2[%c7_11] : memref<10xf32, #tpu.memory_space<smem>>
    %58 = vector.broadcast %57 : f32 to vector<8x128xf32>
    %59 = arith.maximumf %0, %58 : vector<8x128xf32>
    %60 = vector.broadcast %56 : f32 to vector<8x128xf32>
    %61 = arith.mulf %60, %59 : vector<8x128xf32>
    %62 = arith.addf %55, %61 : vector<8x128xf32>
    %c8 = arith.constant 8 : index
    %63 = memref.load %arg1[%c8] : memref<10xf32, #tpu.memory_space<smem>>
    %c8_12 = arith.constant 8 : index
    %64 = memref.load %arg2[%c8_12] : memref<10xf32, #tpu.memory_space<smem>>
    %65 = vector.broadcast %64 : f32 to vector<8x128xf32>
    %66 = arith.maximumf %0, %65 : vector<8x128xf32>
    %67 = vector.broadcast %63 : f32 to vector<8x128xf32>
    %68 = arith.mulf %67, %66 : vector<8x128xf32>
    %69 = arith.addf %62, %68 : vector<8x128xf32>
    %c9 = arith.constant 9 : index
    %70 = memref.load %arg1[%c9] : memref<10xf32, #tpu.memory_space<smem>>
    %c9_13 = arith.constant 9 : index
    %71 = memref.load %arg2[%c9_13] : memref<10xf32, #tpu.memory_space<smem>>
    %72 = vector.broadcast %71 : f32 to vector<8x128xf32>
    %73 = arith.maximumf %0, %72 : vector<8x128xf32>
    %74 = vector.broadcast %70 : f32 to vector<8x128xf32>
    %75 = arith.mulf %74, %73 : vector<8x128xf32>
    %76 = arith.addf %69, %75 : vector<8x128xf32>
    %c0_14 = arith.constant 0 : index
    %c0_15 = arith.constant 0 : index
    %77 = vector.load %arg5[%c0_14, %c0_15] : memref<8x128xf32, #tpu.memory_space<vmem>>, vector<8x128xf32>
    tpu.vector_store %arg5[%c0_14, %c0_15], %76 {strides = array<i32>} : memref<8x128xf32, #tpu.memory_space<vmem>>, vector<8x128xf32>,
    return
  }
  func.func @transform_0(%arg0: i32) -> i32 {
    %c0_i32 = arith.constant 0 : i32
    %c0_i32_0 = arith.constant 0 : i32
    return %c0_i32 : i32
  }
  func.func @transform_1(%arg0: i32) -> i32 {
    %c0_i32 = arith.constant 0 : i32
    %c0_i32_0 = arith.constant 0 : i32
    return %c0_i32 : i32
  }
  func.func @transform_2(%arg0: i32) -> i32 {
    %c0_i32 = arith.constant 0 : i32
    %c0_i32_0 = arith.constant 0 : i32
    return %c0_i32 : i32
  }
  func.func @transform_3(%arg0: i32) -> (i32, i32) {
    %c0_i32 = arith.constant 0 : i32
    %c0_i32_0 = arith.constant 0 : i32
    return %arg0, %c0_i32 : i32, i32
  }
  func.func @transform_4(%arg0: i32) -> (i32, i32) {
    %c0_i32 = arith.constant 0 : i32
    %c0_i32_0 = arith.constant 0 : i32
    return %arg0, %c0_i32 : i32, i32
  }
}

</mosaic_0001>

<llo_original>
// kernel: pidnn_forward.1
$region0: #{pidnn_forward.1}
  #allocation0 [shape = 'u32[]', space=smem, size = 0x4, offset = 0x4, fixed_abs, tag = 'smem constant byte address 0x4 - core index']
  #allocation1 [shape = 'u32[144,128]{1,0:T(1,128)}', space=vmem, size = 0x12000, scoped, tag = 'internal scratch']
  %s0 = inlined_call_operand.vmem [shape: f32[10], index: 0, kind: input, shape index: {}]
  %s1 = inlined_call_operand.vmem [shape: f32[10], index: 1, kind: input, shape index: {}]
  %s2 = inlined_call_operand.vmem [shape: f32[2], index: 2, kind: input, shape index: {}]
  %s3 = inlined_call_operand.vmem [shape: f32[8,128], index: 3, kind: input, shape index: {}]
  %s4 = inlined_call_operand.hbm [shape: f32[8,128], index: 4, kind: output, shape index: {}]
  %s5 = sld [smem:[#allocation0]]
  $region38: #{pidnn_forward.1} parent=0
    _
  %s7 = ssub.s32 1, %s5
  %s8 = scalar_select 0, %s7, %s5
  $region1: #{pidnn_forward.1} parent=0
    #allocation2 [shape = 'u8[512]{0}', space=smem, size = 0x200, scoped, tag = 'input window, operand 0, single buffered']
    #allocation3 [shape = 's32[1]{0}', space=sflag, size = 0x4, scoped, tag = 'scoped memory for pidnn_forward.1']
    #allocation4 [shape = 's32[1]{0}', space=sflag, size = 0x4, scoped, tag = 'scoped memory for pidnn_forward.1']
    #allocation5 [shape = 'u8[512]{0}', space=smem, size = 0x200, scoped, tag = 'input window, operand 1, single buffered']
    #allocation6 [shape = 's32[1]{0}', space=sflag, size = 0x4, scoped, tag = 'scoped memory for pidnn_forward.1']
    #allocation7 [shape = 'u8[512]{0}', space=smem, size = 0x200, scoped, tag = 'input window, operand 2, single buffered']
    #allocation8 [shape = 'u8[4096]{0}', space=vmem, size = 0x1000, scoped, tag = 'output window, operand 0, single buffered']
    %9 = vsyncpa [#allocation4], 0
    %10 = vsyncpa [#allocation6], 0
    %11 = vsyncpa [#allocation3], 0
    // Predicated region
    $region2: #{pidnn_forward.1} parent=1 // pred_check
      _
    $region3: #{pidnn_forward.1} parent=1 // pred_check_branch
      %13 = sbr.rel (0) target = $region5
    $region4: #{pidnn_forward.1} parent=1 // pred_region
      %s15 = ssub.s32 16, 16
      %16 = vsyncadd [#allocation4], %s15
      %s18 = sshll.u32 %s0, 4
      %s19 = int_to_ptr.vmem [resolvable:$true] %s18
      %21 = dma.vmem_to_smem %s19, 16, [#allocation2], [#allocation4]
    $region5: #{pidnn_forward.1} parent=1 // pred_fallthru
      _
    // Predicated region
    $region6: #{pidnn_forward.1} parent=1 // pred_check
      _
    $region7: #{pidnn_forward.1} parent=1 // pred_check_branch
      %23 = sbr.rel (0) target = $region9
    $region8: #{pidnn_forward.1} parent=1 // pred_region
      %s25 = ssub.s32 16, 16
      %26 = vsyncadd [#allocation6], %s25
      %s28 = sshll.u32 %s1, 4
      %s29 = int_to_ptr.vmem [resolvable:$true] %s28
      %31 = dma.vmem_to_smem %s29, 16, [#allocation5], [#allocation6]
    $region9: #{pidnn_forward.1} parent=1 // pred_fallthru
      _
    // Predicated region
    $region10: #{pidnn_forward.1} parent=1 // pred_check
      _
    $region11: #{pidnn_forward.1} parent=1 // pred_check_branch
      %33 = sbr.rel (0) target = $region13
    $region12: #{pidnn_forward.1} parent=1 // pred_region
      %s35 = ssub.s32 16, 16
      %36 = vsyncadd [#allocation6], %s35
      %s38 = sshll.u32 %s2, 4
      %s39 = int_to_ptr.vmem [resolvable:$true] %s38
      %41 = dma.vmem_to_smem %s39, 16, [#allocation7], [#allocation6]
    $region13: #{pidnn_forward.1} parent=1 // pred_fallthru
      _
    // Predicated region
    $region14: #{pidnn_forward.1} parent=1 // pred_check
      _
    $region15: #{pidnn_forward.1} parent=1 // pred_check_branch
      %43 = sbr.rel (0) target = $region17
    $region16: #{pidnn_forward.1} parent=1 // pred_region
      _
    $region17: #{pidnn_forward.1} parent=1 // pred_fallthru
      _
    // Predicated region
    $region18: #{pidnn_forward.1} parent=1 // pred_check
      _
    $region19: #{pidnn_forward.1} parent=1 // pred_check_branch
      %45 = sbr.rel (0) target = $region21
    $region20: #{pidnn_forward.1} parent=1 // pred_region
      %46 = dma.done [#allocation4], 16
    $region21: #{pidnn_forward.1} parent=1 // pred_fallthru
      _
    // Predicated region
    $region22: #{pidnn_forward.1} parent=1 // pred_check
      _
    $region23: #{pidnn_forward.1} parent=1 // pred_check_branch
      %48 = sbr.rel (0) target = $region25
    $region24: #{pidnn_forward.1} parent=1 // pred_region
      %49 = dma.done [#allocation6], 16
    $region25: #{pidnn_forward.1} parent=1 // pred_fallthru
      _
    // Predicated region
    $region26: #{pidnn_forward.1} parent=1 // pred_check
      _
    $region27: #{pidnn_forward.1} parent=1 // pred_check_branch
      %51 = sbr.rel (0) target = $region29
    $region28: #{pidnn_forward.1} parent=1 // pred_region
      %52 = dma.done [#allocation6], 16
    $region29: #{pidnn_forward.1} parent=1 // pred_fallthru
      _
    %53 = sfence
    %v54 = vld [vmem:[%s3] sm:$0xff]
    %s55 = sld [smem:[#allocation7]]
    %v56 = vstv %s55
    %v57 = vmul.f32 %v56, %v54
    %s58 = sld [smem:[#allocation7 + $0x1]]
    %v59 = vstv %s58
    %v60 = vadd.f32 %v57, %v59
    %s61 = sld [smem:[#allocation2]]
    %s62 = sld [smem:[#allocation5]]
    %v63 = vstv %s62
    %v64 = vmax.f32 %v54, %v63
    %v65 = vstv %s61
    %v66 = vmul.f32 %v65, %v64
    %v67 = vadd.f32 %v60, %v66
    %s68 = sld [smem:[#allocation2 + $0x1]]
    %s69 = sld [smem:[#allocation5 + $0x1]]
    %v70 = vstv %s69
    %v71 = vmax.f32 %v54, %v70
    %v72 = vstv %s68
    %v73 = vmul.f32 %v72, %v71
    %v74 = vadd.f32 %v67, %v73
    %s75 = sld [smem:[#allocation2 + $0x2]]
    %s76 = sld [smem:[#allocation5 + $0x2]]
    %v77 = vstv %s76
    %v78 = vmax.f32 %v54, %v77
    %v79 = vstv %s75
    %v80 = vmul.f32 %v79, %v78
    %v81 = vadd.f32 %v74, %v80
    %s82 = sld [smem:[#allocation2 + $0x3]]
    %s83 = sld [smem:[#allocation5 + $0x3]]
    %v84 = vstv %s83
    %v85 = vmax.f32 %v54, %v84
    %v86 = vstv %s82
    %v87 = vmul.f32 %v86, %v85
    %v88 = vadd.f32 %v81, %v87
    %s89 = sld [smem:[#allocation2 + $0x4]]
    %s90 = sld [smem:[#allocation5 + $0x4]]
    %v91 = vstv %s90
    %v92 = vmax.f32 %v54, %v91
    %v93 = vstv %s89
    %v94 = vmul.f32 %v93, %v92
    %v95 = vadd.f32 %v88, %v94
    %s96 = sld [smem:[#allocation2 + $0x5]]
    %s97 = sld [smem:[#allocation5 + $0x5]]
    %v98 = vstv %s97
    %v99 = vmax.f32 %v54, %v98
    %v100 = vstv %s96
    %v101 = vmul.f32 %v100, %v99
    %v102 = vadd.f32 %v95, %v101
    %s103 = sld [smem:[#allocation2 + $0x6]]
    %s104 = sld [smem:[#allocation5 + $0x6]]
    %v105 = vstv %s104
    %v106 = vmax.f32 %v54, %v105
    %v107 = vstv %s103
    %v108 = vmul.f32 %v107, %v106
    %v109 = vadd.f32 %v102, %v108
    %s110 = sld [smem:[#allocation2 + $0x7]]
    %s111 = sld [smem:[#allocation5 + $0x7]]
    %v112 = vstv %s111
    %v113 = vmax.f32 %v54, %v112
    %v114 = vstv %s110
    %v115 = vmul.f32 %v114, %v113
    %v116 = vadd.f32 %v109, %v115
    %s117 = sld [smem:[#allocation2 + $0x8]]
    %s118 = sld [smem:[#allocation5 + $0x8]]
    %v119 = vstv %s118
    %v120 = vmax.f32 %v54, %v119
    %v121 = vstv %s117
    %v122 = vmul.f32 %v121, %v120
    %v123 = vadd.f32 %v116, %v122
    %s124 = sld [smem:[#allocation2 + $0x9]]
    %s125 = sld [smem:[#allocation5 + $0x9]]
    %v126 = vstv %s125
    %v127 = vmax.f32 %v54, %v126
    %v128 = vstv %s124
    %v129 = vmul.f32 %v128, %v127
    %v130 = vadd.f32 %v123, %v129
    %131 = vst [vmem:[#allocation8] sm:$0xff] %v130
    // Predicated region
    $region30: #{pidnn_forward.1} parent=1 // pred_check
      _
    $region31: #{pidnn_forward.1} parent=1 // pred_check_branch
      %133 = sbr.rel (0) target = $region33
    $region32: #{pidnn_forward.1} parent=1 // pred_region
      %s135 = ssub.s32 128, 128
      %136 = vsyncadd [#allocation3], %s135
      %s138 = sshll.u32 [#allocation8], 4
      %s139 = int_to_ptr.vmem [resolvable:$true] %s138
      %141 = dma.vmem_to_hbm [thread:$0]  %s139, 128, %s4, [#allocation3]
    $region33: #{pidnn_forward.1} parent=1 // pred_fallthru
      _
    // Predicated region
    $region34: #{pidnn_forward.1} parent=1 // pred_check
      _
    $region35: #{pidnn_forward.1} parent=1 // pred_check_branch
      %143 = sbr.rel (0) target = $region37
    $region36: #{pidnn_forward.1} parent=1 // pred_region
      %144 = dma.done [#allocation3], 128
    $region37: #{pidnn_forward.1} parent=1 // pred_fallthru
      _
    %145 = vsyncpa [#allocation3], 1
    %146 = vsyncpa [#allocation4], 1
    %147 = vsyncpa [#allocation6], 1

</llo_original>
